<compile_context>
chip_gen: v7x
topology: tpu7x:2x2x1
jax: 0.10.0
libtpu: 0.0.40
codegen_flags: <defaults>
</compile_context>

<pallas_src>
import functools

import jax
import jax.numpy as jnp
from jax.experimental import pallas as pl
from jax.experimental.pallas import tpu as pltpu

BN_EPS = 1e-5
LANE = 128  # lane-dense padded width for the fc3 output


def actor_kernel(x_ref, w1_ref, w2_ref, w3_ref, vec_ref, out_ref,
                 *, fc1_units, fc2_units):
    x = x_ref[...]                                   # (B, S)
    inv_b = 1.0 / x.shape[0]

    # Packed per-layer row vectors: one (8, 128) slab instead of 5+ tiny inputs.
    slab = vec_ref[...]
    g1 = slab[0:1, :fc1_units]
    be1 = slab[1:2, :fc1_units]
    g2 = slab[2:3, :fc2_units]
    be2 = slab[3:4, :fc2_units]
    b3 = slab[4:5, :]                                # (1, LANE), zero-padded

    def bn_relu(h, g, be):
        # Single-pass batch stats: one reduction sweep over h instead of two.
        s = jnp.sum(h, axis=0, keepdims=True)
        ss = jnp.sum(h * h, axis=0, keepdims=True)
        mu = s * inv_b
        var = jnp.maximum(ss * inv_b - mu * mu, 0.0)  # biased variance
        a = g * jax.lax.rsqrt(var + BN_EPS)           # (1, N) scale
        c = be - mu * a                               # (1, N) shift
        return jnp.maximum(h * a + c, 0.0)            # relu

    # fc1 / fc2 biases intentionally omitted: exactly cancelled by the
    # training-mode BN mean subtraction (do NOT drop them for eval-mode BN).
    h1 = bn_relu(jnp.dot(x, w1_ref[...], preferred_element_type=jnp.float32),
                 g1, be1)
    h2 = bn_relu(jnp.dot(h1, w2_ref[...], preferred_element_type=jnp.float32),
                 g2, be2)

    # fc3 (padded to LANE output columns) + tanh; padded columns are tanh(0)=0.
    h3 = jnp.dot(h2, w3_ref[...], preferred_element_type=jnp.float32) + b3
    out_ref[...] = jnp.tanh(h3)


def pack_actor_params(params):
    """One-time repack of the small per-layer vectors + fc3 padding."""
    fc1 = params["w1"].shape[1]
    fc2 = params["w2"].shape[1]
    act = params["w3"].shape[1]
    assert fc1 <= LANE and fc2 <= LANE and act <= LANE

    slab = jnp.zeros((8, LANE), jnp.float32)
    slab = slab.at[0, :fc1].set(params["g1"].reshape(-1))
    slab = slab.at[1, :fc1].set(params["be1"].reshape(-1))
    slab = slab.at[2, :fc2].set(params["g2"].reshape(-1))
    slab = slab.at[3, :fc2].set(params["be2"].reshape(-1))
    slab = slab.at[4, :act].set(params["b3"].reshape(-1))

    w3p = jnp.zeros((fc2, LANE), jnp.float32).at[:, :act].set(params["w3"])

    return {"w1": params["w1"], "w2": params["w2"], "w3p": w3p,
            "slab": slab, "action_size": act}


def actor_forward(x, packed):
    """x: (B, state_size) f32.  packed: output of pack_actor_params."""
    if x.ndim == 1:
        # Mirrors torch's unsqueeze(0).
        # TODO(synk): training-mode BatchNorm with batch size 1 is rejected by
        # PyTorch; this path is kept only for shape parity.
        x = x[None, :]
    B = x.shape[0]
    fc1 = packed["w1"].shape[1]
    fc2 = packed["w2"].shape[1]

    vmem = pl.BlockSpec(memory_space=pltpu.MemorySpace.VMEM)
    kernel = functools.partial(actor_kernel, fc1_units=fc1, fc2_units=fc2)
    # Gridless: whole problem fits trivially in VMEM at this size. For large B,
    # add a "parallel" batch grid + two-pass BN so the stats decouple from tiles.
    out_padded = pl.pallas_call(
        kernel,
        out_shape=jax.ShapeDtypeStruct((B, LANE), jnp.float32),
        in_specs=[vmem] * 5,
        out_specs=vmem,
    )(x, packed["w1"], packed["w2"], packed["w3p"], packed["slab"])
    return out_padded[:, :packed["action_size"]]


def init_actor_params(key, state_size, action_size, fc1_units=128, fc2_units=64):
    """Init mirroring Actor.reset_parameters layout (weights stored (in, out))."""
    k1, k2, k3, kb1, kb2, kb3 = jax.random.split(key, 6)

    def uni(k, shape, lim):
        return jax.random.uniform(k, shape, jnp.float32, -lim, lim)

    lim1 = 1.0 / jnp.sqrt(float(fc1_units))
    lim2 = 1.0 / jnp.sqrt(float(fc2_units))
    return {
        "w1": uni(k1, (state_size, fc1_units), lim1),
        "b1": uni(kb1, (1, fc1_units), 1.0 / jnp.sqrt(float(state_size))),
        "g1": jnp.ones((1, fc1_units), jnp.float32),
        "be1": jnp.zeros((1, fc1_units), jnp.float32),
        "w2": uni(k2, (fc1_units, fc2_units), lim2),
        "b2": uni(kb2, (1, fc2_units), 1.0 / jnp.sqrt(float(fc1_units))),
        "g2": jnp.ones((1, fc2_units), jnp.float32),
        "be2": jnp.zeros((1, fc2_units), jnp.float32),
        "w3": uni(k3, (fc2_units, action_size), 0.003),
        "b3": uni(kb3, (1, action_size), 1.0 / jnp.sqrt(float(fc2_units))),
    }


def actor_reference(x, p):
    """Pure-JAX reference with the full module semantics (incl. fc1/fc2 bias)."""
    if x.ndim == 1:
        x = x[None, :]

    def bn(h, g, b):
        mu = jnp.mean(h, axis=0, keepdims=True)
        var = jnp.mean((h - mu) ** 2, axis=0, keepdims=True)
        return (h - mu) / jnp.sqrt(var + BN_EPS) * g + b

    h = jax.nn.relu(bn(x @ p["w1"] + p["b1"], p["g1"], p["be1"]))
    h = jax.nn.relu(bn(h @ p["w2"] + p["b2"], p["g2"], p["be2"]))
    return jnp.tanh(h @ p["w3"] + p["b3"])


if __name__ == "__main__":
    key = jax.random.PRNGKey(0)
    kx, kp = jax.random.split(key)

    batch, state_size, action_size = 8, 32, 4
    fc1_units, fc2_units = 128, 64

    x = jax.random.normal(kx, (batch, state_size), jnp.float32)
    params = init_actor_params(kp, state_size, action_size, fc1_units, fc2_units)
    packed = pack_actor_params(params)

    out = jax.block_until_ready(actor_forward(x, packed))
    ref = actor_reference(x, params)

    assert out.shape == (batch, action_size), out.shape
    assert jnp.allclose(out, ref, atol=2e-5, rtol=2e-5), (
        float(jnp.max(jnp.abs(out - ref))))

    print("KERNEL_OK")
</pallas_src>

<mosaic_0001>
module attributes {stable_mosaic.version = 11 : i64} {
  func.func @actor_kernel(%arg0: memref<8x32xf32, #tpu.memory_space<vmem>>, %arg1: memref<32x128xf32, #tpu.memory_space<vmem>>, %arg2: memref<128x64xf32, #tpu.memory_space<vmem>>, %arg3: memref<64x128xf32, #tpu.memory_space<vmem>>, %arg4: memref<8x128xf32, #tpu.memory_space<vmem>>, %arg5: memref<8x128xf32, #tpu.memory_space<vmem>>) attributes {dimension_semantics = [], scalar_prefetch = 0 : i64, scratch_operands = 0 : i64, tpu.core_type = #tpu.core_type<tc>} {
    %c0 = arith.constant 0 : index
    %c0_0 = arith.constant 0 : index
    %0 = vector.load %arg0[%c0, %c0_0] : memref<8x32xf32, #tpu.memory_space<vmem>>, vector<8x32xf32>
    %c0_1 = arith.constant 0 : index
    %c0_2 = arith.constant 0 : index
    %1 = vector.load %arg4[%c0_1, %c0_2] : memref<8x128xf32, #tpu.memory_space<vmem>>, vector<8x128xf32>
    %2 = vector.extract_strided_slice %1 {offsets = [0, 0], sizes = [1, 128], strides = [1, 1]} : vector<8x128xf32> to vector<1x128xf32>
    %3 = vector.extract_strided_slice %1 {offsets = [1, 0], sizes = [1, 128], strides = [1, 1]} : vector<8x128xf32> to vector<1x128xf32>
    %4 = vector.extract_strided_slice %1 {offsets = [2, 0], sizes = [1, 64], strides = [1, 1]} : vector<8x128xf32> to vector<1x64xf32>
    %5 = vector.extract_strided_slice %1 {offsets = [3, 0], sizes = [1, 64], strides = [1, 1]} : vector<8x128xf32> to vector<1x64xf32>
    %6 = vector.extract_strided_slice %1 {offsets = [4, 0], sizes = [1, 128], strides = [1, 1]} : vector<8x128xf32> to vector<1x128xf32>
    %c0_3 = arith.constant 0 : index
    %c0_4 = arith.constant 0 : index
    %7 = vector.load %arg1[%c0_3, %c0_4] : memref<32x128xf32, #tpu.memory_space<vmem>>, vector<32x128xf32>
    %cst = arith.constant dense<0.000000e+00> : vector<8x128xf32>
    %8 = tpu.matmul %0, %7, %cst {dimension_numbers = #tpu.dot_dimension_numbers<[1], [0], [0], [1], [0, 0, 1, 1], [], []>} : vector<8x32xf32>, vector<32x128xf32>, vector<8x128xf32> -> vector<8x128xf32>
    %cst_5 = arith.constant dense<0.000000e+00> : vector<128xf32>
    %9 = vector.multi_reduction <add>, %8, %cst_5 [0] : vector<8x128xf32> to vector<128xf32>
    %10 = vector.shape_cast %9 : vector<128xf32> to vector<1x128xf32>
    %11 = arith.mulf %8, %8 : vector<8x128xf32>
    %cst_6 = arith.constant dense<0.000000e+00> : vector<128xf32>
    %12 = vector.multi_reduction <add>, %11, %cst_6 [0] : vector<8x128xf32> to vector<128xf32>
    %13 = vector.shape_cast %12 : vector<128xf32> to vector<1x128xf32>
    %cst_7 = arith.constant 1.250000e-01 : f32
    %14 = vector.broadcast %cst_7 : f32 to vector<1x128xf32>
    %15 = arith.mulf %10, %14 : vector<1x128xf32>
    %cst_8 = arith.constant 1.250000e-01 : f32
    %16 = vector.broadcast %cst_8 : f32 to vector<1x128xf32>
    %17 = arith.mulf %13, %16 : vector<1x128xf32>
    %18 = arith.mulf %15, %15 : vector<1x128xf32>
    %19 = arith.subf %17, %18 : vector<1x128xf32>
    %cst_9 = arith.constant 0.000000e+00 : f32
    %20 = vector.broadcast %cst_9 : f32 to vector<1x128xf32>
    %21 = arith.maximumf %19, %20 : vector<1x128xf32>
    %cst_10 = arith.constant 9.99999974E-6 : f32
    %22 = vector.broadcast %cst_10 : f32 to vector<1x128xf32>
    %23 = arith.addf %21, %22 : vector<1x128xf32>
    %24 = math.rsqrt %23 : vector<1x128xf32>
    %25 = arith.mulf %2, %24 : vector<1x128xf32>
    %26 = arith.mulf %15, %25 : vector<1x128xf32>
    %27 = arith.subf %3, %26 : vector<1x128xf32>
    %28 = vector.broadcast %25 : vector<1x128xf32> to vector<8x128xf32>
    %29 = arith.mulf %8, %28 : vector<8x128xf32>
    %30 = vector.broadcast %27 : vector<1x128xf32> to vector<8x128xf32>
    %31 = arith.addf %29, %30 : vector<8x128xf32>
    %cst_11 = arith.constant 0.000000e+00 : f32
    %32 = vector.broadcast %cst_11 : f32 to vector<8x128xf32>
    %33 = arith.maximumf %31, %32 : vector<8x128xf32>
    %c0_12 = arith.constant 0 : index
    %c0_13 = arith.constant 0 : index
    %34 = vector.load %arg2[%c0_12, %c0_13] : memref<128x64xf32, #tpu.memory_space<vmem>>, vector<128x64xf32>
    %cst_14 = arith.constant dense<0.000000e+00> : vector<8x64xf32>
    %35 = tpu.matmul %33, %34, %cst_14 {dimension_numbers = #tpu.dot_dimension_numbers<[1], [0], [0], [1], [0, 0, 1, 1], [], []>} : vector<8x128xf32>, vector<128x64xf32>, vector<8x64xf32> -> vector<8x64xf32>
    %cst_15 = arith.constant dense<0.000000e+00> : vector<64xf32>
    %36 = vector.multi_reduction <add>, %35, %cst_15 [0] : vector<8x64xf32> to vector<64xf32>
    %37 = vector.shape_cast %36 : vector<64xf32> to vector<1x64xf32>
    %38 = arith.mulf %35, %35 : vector<8x64xf32>
    %cst_16 = arith.constant dense<0.000000e+00> : vector<64xf32>
    %39 = vector.multi_reduction <add>, %38, %cst_16 [0] : vector<8x64xf32> to vector<64xf32>
    %40 = vector.shape_cast %39 : vector<64xf32> to vector<1x64xf32>
    %cst_17 = arith.constant 1.250000e-01 : f32
    %41 = vector.broadcast %cst_17 : f32 to vector<1x64xf32>
    %42 = arith.mulf %37, %41 : vector<1x64xf32>
    %cst_18 = arith.constant 1.250000e-01 : f32
    %43 = vector.broadcast %cst_18 : f32 to vector<1x64xf32>
    %44 = arith.mulf %40, %43 : vector<1x64xf32>
    %45 = arith.mulf %42, %42 : vector<1x64xf32>
    %46 = arith.subf %44, %45 : vector<1x64xf32>
    %cst_19 = arith.constant 0.000000e+00 : f32
    %47 = vector.broadcast %cst_19 : f32 to vector<1x64xf32>
    %48 = arith.maximumf %46, %47 : vector<1x64xf32>
    %cst_20 = arith.constant 9.99999974E-6 : f32
    %49 = vector.broadcast %cst_20 : f32 to vector<1x64xf32>
    %50 = arith.addf %48, %49 : vector<1x64xf32>
    %51 = math.rsqrt %50 : vector<1x64xf32>
    %52 = arith.mulf %4, %51 : vector<1x64xf32>
    %53 = arith.mulf %42, %52 : vector<1x64xf32>
    %54 = arith.subf %5, %53 : vector<1x64xf32>
    %55 = vector.broadcast %52 : vector<1x64xf32> to vector<8x64xf32>
    %56 = arith.mulf %35, %55 : vector<8x64xf32>
    %57 = vector.broadcast %54 : vector<1x64xf32> to vector<8x64xf32>
    %58 = arith.addf %56, %57 : vector<8x64xf32>
    %cst_21 = arith.constant 0.000000e+00 : f32
    %59 = vector.broadcast %cst_21 : f32 to vector<8x64xf32>
    %60 = arith.maximumf %58, %59 : vector<8x64xf32>
    %c0_22 = arith.constant 0 : index
    %c0_23 = arith.constant 0 : index
    %61 = vector.load %arg3[%c0_22, %c0_23] : memref<64x128xf32, #tpu.memory_space<vmem>>, vector<64x128xf32>
    %cst_24 = arith.constant dense<0.000000e+00> : vector<8x128xf32>
    %62 = tpu.matmul %60, %61, %cst_24 {dimension_numbers = #tpu.dot_dimension_numbers<[1], [0], [0], [1], [0, 0, 1, 1], [], []>} : vector<8x64xf32>, vector<64x128xf32>, vector<8x128xf32> -> vector<8x128xf32>
    %63 = vector.broadcast %6 : vector<1x128xf32> to vector<8x128xf32>
    %64 = arith.addf %62, %63 : vector<8x128xf32>
    %65 = math.tanh %64 : vector<8x128xf32>
    %c0_25 = arith.constant 0 : index
    %c0_26 = arith.constant 0 : index
    %66 = vector.load %arg5[%c0_25, %c0_26] : memref<8x128xf32, #tpu.memory_space<vmem>>, vector<8x128xf32>
    tpu.vector_store %arg5[%c0_25, %c0_26], %65 {strides = array<i32>} : memref<8x128xf32, #tpu.memory_space<vmem>>, vector<8x128xf32>,
    return
  }
}

</mosaic_0001>

<llo_original>
// kernel: tpu_custom_call.1
$region0: #{tpu_custom_call.1}
  #allocation0 [shape = 'u32[]', space=smem, size = 0x4, offset = 0x4, fixed_abs, tag = 'smem constant byte address 0x4 - core index']
  #allocation1 [shape = 'u32[144,128]{1,0:T(1,128)}', space=vmem, size = 0x12000, scoped, tag = 'internal scratch']
  %s0 = inlined_call_operand.vmem [shape: f32[8,32], index: 0, kind: input, shape index: {}]
  %s1 = inlined_call_operand.vmem [shape: f32[32,128], index: 1, kind: input, shape index: {}]
  %s2 = inlined_call_operand.vmem [shape: f32[128,64], index: 2, kind: input, shape index: {}]
  %s3 = inlined_call_operand.vmem [shape: f32[64,128], index: 3, kind: input, shape index: {}]
  %s4 = inlined_call_operand.vmem [shape: f32[8,128], index: 4, kind: input, shape index: {}]
  %s5 = inlined_call_operand.hbm [shape: f32[8,128], index: 5, kind: output, shape index: {}]
  %s6 = sld [smem:[#allocation0]]
  $region30: #{tpu_custom_call.1} parent=0
    _
  %s8 = ssub.s32 1, %s6
  %s9 = scalar_select 0, %s8, %s6
  $region1: #{tpu_custom_call.1} parent=0
    #allocation2 [shape = 'u8[4096]{0}', space=vmem, size = 0x1000, scoped, tag = 'output window, operand 0, single buffered']
    #allocation3 [shape = 's32[1]{0}', space=sflag, size = 0x4, scoped, tag = 'scoped memory for tpu_custom_call.1']
    %10 = vsyncpa [#allocation3], 0
    // Predicated region
    $region2: #{tpu_custom_call.1} parent=1 // pred_check
      _
    $region3: #{tpu_custom_call.1} parent=1 // pred_check_branch
      %12 = sbr.rel (0) target = $region5
    $region4: #{tpu_custom_call.1} parent=1 // pred_region
      _
    $region5: #{tpu_custom_call.1} parent=1 // pred_fallthru
      _
    // Predicated region
    $region6: #{tpu_custom_call.1} parent=1 // pred_check
      _
    $region7: #{tpu_custom_call.1} parent=1 // pred_check_branch
      %14 = sbr.rel (0) target = $region9
    $region8: #{tpu_custom_call.1} parent=1 // pred_region
      _
    $region9: #{tpu_custom_call.1} parent=1 // pred_fallthru
      _
    // Predicated region
    $region10: #{tpu_custom_call.1} parent=1 // pred_check
      _
    $region11: #{tpu_custom_call.1} parent=1 // pred_check_branch
      %16 = sbr.rel (0) target = $region13
    $region12: #{tpu_custom_call.1} parent=1 // pred_region
      _
    $region13: #{tpu_custom_call.1} parent=1 // pred_fallthru
      _
    // Predicated region
    $region14: #{tpu_custom_call.1} parent=1 // pred_check
      _
    $region15: #{tpu_custom_call.1} parent=1 // pred_check_branch
      %18 = sbr.rel (0) target = $region17
    $region16: #{tpu_custom_call.1} parent=1 // pred_region
      _
    $region17: #{tpu_custom_call.1} parent=1 // pred_fallthru
      _
    // Predicated region
    $region18: #{tpu_custom_call.1} parent=1 // pred_check
      _
    $region19: #{tpu_custom_call.1} parent=1 // pred_check_branch
      %20 = sbr.rel (0) target = $region21
    $region20: #{tpu_custom_call.1} parent=1 // pred_region
      _
    $region21: #{tpu_custom_call.1} parent=1 // pred_fallthru
      _
    %v21 = vld [vmem:[%s0] sm:$0xff]
    %v22 = vld [vmem:[%s4] sm:$0xff]
    %v23 = vld [vmem:[%s1] sm:$0xff]
    %v24 = vld [vmem:[%s1 + $0x8] sm:$0xff]
    %v25 = vld [vmem:[%s1 + $0x10] sm:$0xff]
    %v26 = vld [vmem:[%s1 + $0x18] sm:$0xff]
    %vm27 = vcmask 261120
    %v29 = vsel %vm27, %v21, 0
    %31 = vmatprep.subr.mxu0 0.0
    %32 = vmatpush1.msra.mxu0 %v23
    %33 = vmatprep.subr.mxu0 0.0
    %34 = vmatpush1.msra.mxu0 %v24
    %35 = vmatprep.subr.mxu0 0.0
    %36 = vmatpush1.msra.mxu0 %v25
    %37 = vmatprep.subr.mxu0 0.0
    %38 = vmatpush1.msra.mxu0 %v26
    %39 = vmatprep.subr.mxu0 0.0
    %40 = vmatpush1.msra.mxu0 0.0
    %41 = vmatprep.subr.mxu0 0.0
    %42 = vmatpush1.msra.mxu0 0.0
    %43 = vmatprep.subr.mxu0 0.0
    %44 = vmatpush1.msra.mxu0 0.0
    %45 = vmatprep.subr.mxu0 0.0
    %46 = vmatpush1.msra.mxu0 0.0
    %47 = vmatprep.subr.mxu0 0.0
    %48 = vmatpush1.msra.mxu0 0.0
    %49 = vmatprep.subr.mxu0 0.0
    %50 = vmatpush1.msra.mxu0 0.0
    %51 = vmatprep.subr.mxu0 0.0
    %52 = vmatpush1.msra.mxu0 0.0
    %53 = vmatprep.subr.mxu0 0.0
    %54 = vmatpush1.msra.mxu0 0.0
    %55 = vmatprep.subr.mxu0 0.0
    %56 = vmatpush1.msra.mxu0 0.0
    %57 = vmatprep.subr.mxu0 0.0
    %58 = vmatpush1.msra.mxu0 0.0
    %59 = vmatprep.subr.mxu0 0.0
    %60 = vmatpush1.msra.mxu0 0.0
    %61 = vmatprep.subr.mxu0 0.0
    %62 = vmatpush1.msra.mxu0 0.0
    %63 = vmatprep.subr.mxu0 0.0
    %64 = vmatpush1.msra.mxu0 0.0
    %65 = vmatprep.subr.mxu0 0.0
    %66 = vmatpush1.msra.mxu0 0.0
    %67 = vmatprep.subr.mxu0 0.0
    %68 = vmatpush1.msra.mxu0 0.0
    %69 = vmatprep.subr.mxu0 0.0
    %70 = vmatpush1.msra.mxu0 0.0
    %71 = vmatprep.subr.mxu0 0.0
    %72 = vmatpush1.msra.mxu0 0.0
    %73 = vmatprep.subr.mxu0 0.0
    %74 = vmatpush1.msra.mxu0 0.0
    %75 = vmatprep.subr.mxu0 0.0
    %76 = vmatpush1.msra.mxu0 0.0
    %77 = vmatprep.subr.mxu0 0.0
    %78 = vmatpush1.msra.mxu0 0.0
    %79 = vmatprep.subr.mxu0 0.0
    %80 = vmatpush1.msra.mxu0 0.0
    %81 = vmatprep.subr.mxu0 0.0
    %82 = vmatpush1.msra.mxu0 0.0
    %83 = vmatprep.subr.mxu0 0.0
    %84 = vmatpush1.msra.mxu0 0.0
    %85 = vmatprep.subr.mxu0 0.0
    %86 = vmatpush1.msra.mxu0 0.0
    %87 = vmatprep.subr.mxu0 0.0
    %88 = vmatpush1.msra.mxu0 0.0
    %89 = vmatprep.subr.mxu0 0.0
    %90 = vmatpush1.msra.mxu0 0.0
    %91 = vmatprep.subr.mxu0 0.0
    %92 = vmatpush1.msra.mxu0 0.0
    %93 = vmatprep.subr.mxu0 0.0
    %94 = vmatpush1.msra.mxu0 0.0
    %95 = vmatprep.mubr.f32.mxu0 0.0
    %96 = vmatmul.mubr.f32.gmra.mrb[0].mxu0 %v29
    %v97 = vpop.f32.mrb[0].mxu0
    %v98 = vadd.f32 0.0, %v97
    %v99 = vpop.f32.mrb[0].mxu0
    %100 = vdwg.mxu0
    %v101 = vrot.slane %v98, 4
    %v102 = vadd.f32 %v98, %v101
    %v103 = vrot.slane %v102, 2
    %v104 = vadd.f32 %v102, %v103
    %v105 = vrot.slane %v104, 1
    %v106 = vadd.f32 %v104, %v105
    %v107 = vmul.f32 %v98, %v98
    %v108 = vrot.slane %v107, 4
    %v109 = vadd.f32 %v107, %v108
    %v110 = vrot.slane %v109, 2
    %v111 = vadd.f32 %v109, %v110
    %v112 = vrot.slane %v111, 1
    %v113 = vadd.f32 %v111, %v112
    %v114 = vmul.f32 %v106, 0.125
    %v115 = vmul.f32 %v113, 0.125
    %v116 = vmul.f32 %v114, %v114
    %v117 = vsub.f32 %v115, %v116
    %v118 = vmax.f32 %v117, 0.0
    %v119 = vadd.f32 %v118, 1e-05
    %v120 = vrsqrt.pop %v119
    %v121 = vmul.f32 %v22, %v120
    %v122 = vmul.f32 %v114, %v121
    %v124 = vrot.slane %v122, 7
    %v126 = vsub.f32 %v22, %v124
    %v127 = vlaneseq
    %v128 = vshrl.u32 %v127, 7
    %v129 = vsub.s32 0, %v128
    %v130 = vrot.slane %v121, %v129
    %v131 = vmul.f32 %v98, %v130
    %v132 = vlaneseq
    %v133 = vshrl.u32 %v132, 7
    %v134 = vsub.s32 1, %v133
    %v135 = vrot.slane %v126, %v134
    %v136 = vadd.f32 %v131, %v135
    %v137 = vmax.f32 %v136, 0.0
    %v138 = vld [vmem:[%s2] sm:$0xff]
    %v139 = vld [vmem:[%s2 + $0x8] sm:$0xff]
    %v140 = vld [vmem:[%s2 + $0x10] sm:$0xff]
    %v141 = vld [vmem:[%s2 + $0x18] sm:$0xff]
    %v142 = vld [vmem:[%s2 + $0x20] sm:$0xff]
    %v143 = vld [vmem:[%s2 + $0x28] sm:$0xff]
    %v144 = vld [vmem:[%s2 + $0x30] sm:$0xff]
    %v145 = vld [vmem:[%s2 + $0x38] sm:$0xff]
    %v146 = vld [vmem:[%s2 + $0x40] sm:$0xff]
    %v147 = vld [vmem:[%s2 + $0x48] sm:$0xff]
    %v148 = vld [vmem:[%s2 + $0x50] sm:$0xff]
    %v149 = vld [vmem:[%s2 + $0x58] sm:$0xff]
    %v150 = vld [vmem:[%s2 + $0x60] sm:$0xff]
    %v151 = vld [vmem:[%s2 + $0x68] sm:$0xff]
    %v152 = vld [vmem:[%s2 + $0x70] sm:$0xff]
    %v153 = vld [vmem:[%s2 + $0x78] sm:$0xff]
    %154 = vmatprep.subr.mxu0 0.0
    %155 = vmatpush1.msra.mxu0 %v138
    %156 = vmatprep.subr.mxu0 0.0
    %157 = vmatpush1.msra.mxu0 %v139
    %158 = vmatprep.subr.mxu0 0.0
    %159 = vmatpush1.msra.mxu0 %v140
    %160 = vmatprep.subr.mxu0 0.0
    %161 = vmatpush1.msra.mxu0 %v141
    %162 = vmatprep.subr.mxu0 0.0
    %163 = vmatpush1.msra.mxu0 %v142
    %164 = vmatprep.subr.mxu0 0.0
    %165 = vmatpush1.msra.mxu0 %v143
    %166 = vmatprep.subr.mxu0 0.0
    %167 = vmatpush1.msra.mxu0 %v144
    %168 = vmatprep.subr.mxu0 0.0
    %169 = vmatpush1.msra.mxu0 %v145
    %170 = vmatprep.subr.mxu0 0.0
    %171 = vmatpush1.msra.mxu0 %v146
    %172 = vmatprep.subr.mxu0 0.0
    %173 = vmatpush1.msra.mxu0 %v147
    %174 = vmatprep.subr.mxu0 0.0
    %175 = vmatpush1.msra.mxu0 %v148
    %176 = vmatprep.subr.mxu0 0.0
    %177 = vmatpush1.msra.mxu0 %v149
    %178 = vmatprep.subr.mxu0 0.0
    %179 = vmatpush1.msra.mxu0 %v150
    %180 = vmatprep.subr.mxu0 0.0
    %181 = vmatpush1.msra.mxu0 %v151
    %182 = vmatprep.subr.mxu0 0.0
    %183 = vmatpush1.msra.mxu0 %v152
    %184 = vmatprep.subr.mxu0 0.0
    %185 = vmatpush1.msra.mxu0 %v153
    %186 = vmatprep.subr.mxu0 0.0
    %187 = vmatpush1.msra.mxu0 0.0
    %188 = vmatprep.subr.mxu0 0.0
    %189 = vmatpush1.msra.mxu0 0.0
    %190 = vmatprep.subr.mxu0 0.0
    %191 = vmatpush1.msra.mxu0 0.0
    %192 = vmatprep.subr.mxu0 0.0
    %193 = vmatpush1.msra.mxu0 0.0
    %194 = vmatprep.subr.mxu0 0.0
    %195 = vmatpush1.msra.mxu0 0.0
    %196 = vmatprep.subr.mxu0 0.0
    %197 = vmatpush1.msra.mxu0 0.0
    %198 = vmatprep.subr.mxu0 0.0
    %199 = vmatpush1.msra.mxu0 0.0
    %200 = vmatprep.subr.mxu0 0.0
    %201 = vmatpush1.msra.mxu0 0.0
    %202 = vmatprep.subr.mxu0 0.0
    %203 = vmatpush1.msra.mxu0 0.0
    %204 = vmatprep.subr.mxu0 0.0
    %205 = vmatpush1.msra.mxu0 0.0
    %206 = vmatprep.subr.mxu0 0.0
    %207 = vmatpush1.msra.mxu0 0.0
    %208 = vmatprep.subr.mxu0 0.0
    %209 = vmatpush1.msra.mxu0 0.0
    %210 = vmatprep.subr.mxu0 0.0
    %211 = vmatpush1.msra.mxu0 0.0
    %212 = vmatprep.subr.mxu0 0.0
    %213 = vmatpush1.msra.mxu0 0.0
    %214 = vmatprep.subr.mxu0 0.0
    %215 = vmatpush1.msra.mxu0 0.0
    %216 = vmatprep.subr.mxu0 0.0
    %217 = vmatpush1.msra.mxu0 0.0
    %218 = vmatprep.mubr.f32.mxu0 0.0
    %219 = vmatmul.mubr.f32.gmra.mrb[0].mxu0 %v137
    %v220 = vpop.f32.mrb[0].mxu0
    %v221 = vadd.f32 0.0, %v220
    %v222 = vpop.f32.mrb[0].mxu0
    %223 = vdwg.mxu0
    %vm224 = vcmask 523264
    %v225 = vsel %vm224, %v221, 0.0
    %v226 = vrot.slane %v225, 4
    %v227 = vadd.f32 %v225, %v226
    %v228 = vrot.slane %v227, 2
    %v229 = vadd.f32 %v227, %v228
    %v230 = vrot.slane %v229, 1
    %v231 = vadd.f32 %v229, %v230
    %v232 = vmul.f32 %v221, %v221
    %v233 = vsel %vm224, %v232, 0.0
    %v234 = vrot.slane %v233, 4
    %v235 = vadd.f32 %v233, %v234
    %v236 = vrot.slane %v235, 2
    %v237 = vadd.f32 %v235, %v236
    %v238 = vrot.slane %v237, 1
    %v239 = vadd.f32 %v237, %v238
    %v240 = vmul.f32 %v231, 0.125
    %v241 = vmul.f32 %v239, 0.125
    %v242 = vmul.f32 %v240, %v240
    %v243 = vsub.f32 %v241, %v242
    %v244 = vmax.f32 %v243, 0.0
    %v245 = vadd.f32 %v244, 1e-05
    %v246 = vrsqrt.pop %v245
    %v247 = vmul.f32 %v22, %v246
    %v248 = vmul.f32 %v240, %v247
    %v250 = vrot.slane %v248, 7
    %v252 = vsub.f32 %v22, %v250
    %v253 = vlaneseq
    %v254 = vshrl.u32 %v253, 7
    %v255 = vsub.s32 2, %v254
    %v256 = vrot.slane %v247, %v255
    %v257 = vmul.f32 %v221, %v256
    %v258 = vlaneseq
    %v259 = vshrl.u32 %v258, 7
    %v260 = vsub.s32 3, %v259
    %v261 = vrot.slane %v252, %v260
    %v262 = vadd.f32 %v257, %v261
    %v263 = vmax.f32 %v262, 0.0
    %v264 = vld [vmem:[%s3] sm:$0xff]
    %v265 = vld [vmem:[%s3 + $0x8] sm:$0xff]
    %v266 = vld [vmem:[%s3 + $0x10] sm:$0xff]
    %v267 = vld [vmem:[%s3 + $0x18] sm:$0xff]
    %v268 = vld [vmem:[%s3 + $0x20] sm:$0xff]
    %v269 = vld [vmem:[%s3 + $0x28] sm:$0xff]
    %v270 = vld [vmem:[%s3 + $0x30] sm:$0xff]
    %v271 = vld [vmem:[%s3 + $0x38] sm:$0xff]
    %v272 = vlaneseq
    %v273 = vshrl.u32 %v272, 7
    %v274 = vsub.s32 4, %v273
    %v275 = vrot.slane %v22, %v274
    %v277 = vsel %vm224, %v263, 0
    %279 = vmatprep.subr.mxu0 0.0
    %280 = vmatpush1.msra.mxu0 %v264
    %281 = vmatprep.subr.mxu0 0.0
    %282 = vmatpush1.msra.mxu0 %v265
    %283 = vmatprep.subr.mxu0 0.0
    %284 = vmatpush1.msra.mxu0 %v266
    %285 = vmatprep.subr.mxu0 0.0
    %286 = vmatpush1.msra.mxu0 %v267
    %287 = vmatprep.subr.mxu0 0.0
    %288 = vmatpush1.msra.mxu0 %v268
    %289 = vmatprep.subr.mxu0 0.0
    %290 = vmatpush1.msra.mxu0 %v269
    %291 = vmatprep.subr.mxu0 0.0
    %292 = vmatpush1.msra.mxu0 %v270
    %293 = vmatprep.subr.mxu0 0.0
    %294 = vmatpush1.msra.mxu0 %v271
    %295 = vmatprep.subr.mxu0 0.0
    %296 = vmatpush1.msra.mxu0 0.0
    %297 = vmatprep.subr.mxu0 0.0
    %298 = vmatpush1.msra.mxu0 0.0
    %299 = vmatprep.subr.mxu0 0.0
    %300 = vmatpush1.msra.mxu0 0.0
    %301 = vmatprep.subr.mxu0 0.0
    %302 = vmatpush1.msra.mxu0 0.0
    %303 = vmatprep.subr.mxu0 0.0
    %304 = vmatpush1.msra.mxu0 0.0
    %305 = vmatprep.subr.mxu0 0.0
    %306 = vmatpush1.msra.mxu0 0.0
    %307 = vmatprep.subr.mxu0 0.0
    %308 = vmatpush1.msra.mxu0 0.0
    %309 = vmatprep.subr.mxu0 0.0
    %310 = vmatpush1.msra.mxu0 0.0
    %311 = vmatprep.subr.mxu0 0.0
    %312 = vmatpush1.msra.mxu0 0.0
    %313 = vmatprep.subr.mxu0 0.0
    %314 = vmatpush1.msra.mxu0 0.0
    %315 = vmatprep.subr.mxu0 0.0
    %316 = vmatpush1.msra.mxu0 0.0
    %317 = vmatprep.subr.mxu0 0.0
    %318 = vmatpush1.msra.mxu0 0.0
    %319 = vmatprep.subr.mxu0 0.0
    %320 = vmatpush1.msra.mxu0 0.0
    %321 = vmatprep.subr.mxu0 0.0
    %322 = vmatpush1.msra.mxu0 0.0
    %323 = vmatprep.subr.mxu0 0.0
    %324 = vmatpush1.msra.mxu0 0.0
    %325 = vmatprep.subr.mxu0 0.0
    %326 = vmatpush1.msra.mxu0 0.0
    %327 = vmatprep.subr.mxu0 0.0
    %328 = vmatpush1.msra.mxu0 0.0
    %329 = vmatprep.subr.mxu0 0.0
    %330 = vmatpush1.msra.mxu0 0.0
    %331 = vmatprep.subr.mxu0 0.0
    %332 = vmatpush1.msra.mxu0 0.0
    %333 = vmatprep.subr.mxu0 0.0
    %334 = vmatpush1.msra.mxu0 0.0
    %335 = vmatprep.subr.mxu0 0.0
    %336 = vmatpush1.msra.mxu0 0.0
    %337 = vmatprep.subr.mxu0 0.0
    %338 = vmatpush1.msra.mxu0 0.0
    %339 = vmatprep.subr.mxu0 0.0
    %340 = vmatpush1.msra.mxu0 0.0
    %341 = vmatprep.subr.mxu0 0.0
    %342 = vmatpush1.msra.mxu0 0.0
    %343 = vmatprep.mubr.f32.mxu0 0.0
    %344 = vmatmul.mubr.f32.gmra.mrb[0].mxu0 %v277
    %v345 = vpop.f32.mrb[0].mxu0
    %v346 = vadd.f32 %v275, %v345
    %v347 = vpop.f32.mrb[0].mxu0
    %348 = vdwg.mxu0
    %v349 = vtanh.pop %v346
    %350 = vst [vmem:[#allocation2] sm:$0xff] %v349
    // Predicated region
    $region22: #{tpu_custom_call.1} parent=1 // pred_check
      _
    $region23: #{tpu_custom_call.1} parent=1 // pred_check_branch
      %352 = sbr.rel (0) target = $region25
    $region24: #{tpu_custom_call.1} parent=1 // pred_region
      %s354 = ssub.s32 128, 128
      %355 = vsyncadd [#allocation3], %s354
      %s357 = sshll.u32 [#allocation2], 4
      %s358 = int_to_ptr.vmem [resolvable:$true] %s357
      %360 = dma.vmem_to_hbm [thread:$0]  %s358, 128, %s5, [#allocation3]
    $region25: #{tpu_custom_call.1} parent=1 // pred_fallthru
      _
    // Predicated region
    $region26: #{tpu_custom_call.1} parent=1 // pred_check
      _
    $region27: #{tpu_custom_call.1} parent=1 // pred_check_branch
      %362 = sbr.rel (0) target = $region29
    $region28: #{tpu_custom_call.1} parent=1 // pred_region
      %363 = dma.done [#allocation3], 128
    $region29: #{tpu_custom_call.1} parent=1 // pred_fallthru
      _
    %364 = vsyncpa [#allocation3], 1

</llo_original>
